<compile_context>
chip_gen: v6e
topology: v6e:2x2x1
jax: 0.10.0
libtpu: 0.0.40
codegen_flags: <defaults>
</compile_context>

<pallas_src>
import functools

import jax
import jax.numpy as jnp
from jax import lax
from jax.experimental import pallas as pl
from jax.experimental.pallas import tpu as pltpu

_EPS = 1e-12  # keeps rsqrt finite if an embedding row is all zeros
              # (reference would produce NaN there — documented divergence)


def cond_filter_kernel(tokens_ref, table_ref, out_ref, loss_ref):
    """One batch tile.

    tokens_ref: VMEM ((1+C)*bt, 1) int32 — token ids for this tile, laid out
                column-major: rows [0, bt) are event ids, rows
                [(1+c)*bt, (2+c)*bt) are cond-c ids.
    table_ref : VMEM (Vp, E) f32 — event-embedding table (vocab zero-padded
                to a sublane multiple Vp).
    out_ref   : VMEM (bt, (1+C)*E) f32 — concat(raw event emb, filtered conds).
    loss_ref  : SMEM (1, 1) f32 — this tile's partial sum of |scores|.
    """
    n_rows = tokens_ref.shape[0]
    vp, E = table_ref.shape
    bt, width = out_ref.shape
    C = width // E - 1

    # ---- vectorized embedding gather: one-hot @ table on the MXU ----------
    tok = tokens_ref[...]                                         # (n_rows, 1)
    lanes = lax.broadcasted_iota(jnp.int32, (n_rows, vp), 1)
    onehot = (lanes == tok).astype(jnp.float32)                   # (n_rows, Vp)
    gathered = jnp.dot(onehot, table_ref[...],
                       preferred_element_type=jnp.float32)        # (n_rows, E)

    ev = gathered[:bt, :]        # (bt, E)   raw event embeddings
    cd = gathered[bt:, :]        # (C*bt, E) raw cond embeddings, cond-major

    # ---- normalization folded into rsqrt scales (norms never materialized)
    ev_ss = jnp.sum(ev * ev, axis=-1, keepdims=True)              # (bt, 1)
    inv_ev = lax.rsqrt(ev_ss + _EPS)                              # (bt, 1)
    ev_rep = jnp.tile(ev, (C, 1))                                 # (C*bt, E)
    inv_ev_rep = jnp.tile(inv_ev, (C, 1))                         # (C*bt, 1)

    cd_ss = jnp.sum(cd * cd, axis=-1, keepdims=True)              # (C*bt, 1)
    inv_cd = lax.rsqrt(cd_ss + _EPS)                              # (C*bt, 1)
    s_raw = jnp.sum(ev_rep * cd, axis=-1, keepdims=True)          # (C*bt, 1)

    # filtered_cond = cond_nrm * score = cd * (s_raw * inv_ev / ||cd||^2).
    # NOTE: pl.reciprocal(cd_ss, approx=True) was considered (perf review);
    # inv_cd is already needed for the loss term, so squaring it is a single
    # VALU op on a (C*bt, 1) vreg and keeps exact parity with the reference.
    scale = s_raw * inv_ev_rep * (inv_cd * inv_cd)                # (C*bt, 1)
    filtered = cd * scale                                         # (C*bt, E)

    # ---- single full-block store (no masked partial stores) ---------------
    parts = [ev] + [filtered[c * bt:(c + 1) * bt, :] for c in range(C)]
    out_ref[...] = jnp.concatenate(parts, axis=1)                 # (bt, width)

    # score = s_raw * inv_ev * inv_cd ; partial last_loss = sum |score|
    loss_ref[0, 0] = jnp.sum(jnp.abs(s_raw) * (inv_ev_rep * inv_cd))


def cond_filter_forward(tokens, event_table, *, nconds, emb_dim):
    """tokens: (B, 1+nconds) int indices. Returns (out, last_loss)."""
    B, n_tok = tokens.shape
    assert n_tok == 1 + nconds
    vocab = event_table.shape[0]
    width = n_tok * emb_dim

    # Batch tile: sublane multiple so each grid step is one aligned block.
    bt = 8 if B % 8 == 0 else B
    num_tiles = B // bt

    # Per-tile column-major token layout: tile i holds rows
    # [i*(1+C)*bt, (i+1)*(1+C)*bt): first bt event ids, then bt ids per cond.
    tokens_col = (tokens.astype(jnp.int32)
                  .reshape(num_tiles, bt, n_tok)
                  .transpose(0, 2, 1)
                  .reshape(num_tiles * n_tok * bt, 1))

    # Zero-pad vocab to a sublane multiple; padded rows are never selected.
    # TODO(synk): for production vocab sizes keep the table in HBM (pl.ANY)
    # and DMA/gather only the <= B*(1+C) referenced rows (store it in bf16 on
    # v6e/v7x) instead of keeping the whole table resident in VMEM.
    vp = ((vocab + 7) // 8) * 8
    table = jnp.zeros((vp, emb_dim), jnp.float32).at[:vocab].set(
        event_table.astype(jnp.float32))

    cost = pl.CostEstimate(
        flops=2 * B * n_tok * vp * emb_dim + 12 * B * nconds * emb_dim,
        transcendentals=B * n_tok,
        bytes_accessed=4 * (vp * emb_dim + B * n_tok + B * width + num_tiles),
    )

    out, loss_parts = pl.pallas_call(
        cond_filter_kernel,
        out_shape=(
            jax.ShapeDtypeStruct((B, width), jnp.float32),
            jax.ShapeDtypeStruct((num_tiles, 1), jnp.float32),
        ),
        grid=(num_tiles,),
        in_specs=[
            pl.BlockSpec((n_tok * bt, 1), lambda i: (i, 0)),      # tokens
            pl.BlockSpec((vp, emb_dim), lambda i: (0, 0)),        # table (resident)
        ],
        out_specs=(
            pl.BlockSpec((bt, width), lambda i: (i, 0)),          # fused output
            pl.BlockSpec((1, 1), lambda i: (i, 0),
                         memory_space=pltpu.MemorySpace.SMEM),    # per-tile loss
        ),
        compiler_params=pltpu.CompilerParams(
            dimension_semantics=("parallel",)),
        cost_estimate=cost,
    )(tokens_col, table)

    # TODO(synk): the PyTorch module stores last_loss as a side effect and
    # print()s it; here it is returned as a second output instead.
    return out, jnp.sum(loss_parts)


def _reference_forward(tokens, event_table, *, nconds, emb_dim):
    B = tokens.shape[0]
    event_emb = event_table[tokens[:, 0:1]].astype(jnp.float32)   # (B, 1, E)
    cond_emb = event_table[tokens[:, 1:]].astype(jnp.float32)     # (B, C, E)
    ev_nrm = event_emb / jnp.linalg.norm(event_emb, axis=2, keepdims=True)
    cd_nrm = cond_emb / jnp.linalg.norm(cond_emb, axis=2, keepdims=True)
    scores = ev_nrm @ jnp.swapaxes(cd_nrm, 1, 2)                  # (B, 1, C)
    loss = jnp.sum(jnp.abs(scores))
    filtered = cd_nrm * jnp.swapaxes(scores, 1, 2)                # (B, C, E)
    out = jnp.concatenate(
        [event_emb.reshape(B, -1), filtered.reshape(B, -1)], axis=1
    )
    return out, loss


if __name__ == "__main__":
    # Module config (small, consistent with CondFilterT.__init__)
    nevents, nconds, emb_dim = 5, 3, 8
    vocab = nevents + 2
    B = 8

    key = jax.random.PRNGKey(0)
    k_ev, k_cond, k_tok = jax.random.split(key, 3)

    # Deterministic parameter init (nn.Embedding ~ N(0, 1))
    event_table = jax.random.normal(k_ev, (vocab, emb_dim), dtype=jnp.float32)
    cond_table = jax.random.normal(k_cond, (vocab, emb_dim), dtype=jnp.float32)  # unused in forward

    # input: (B, 1 + nconds) integer indices
    tokens = jax.random.randint(k_tok, (B, 1 + nconds), 0, vocab, dtype=jnp.int32)

    fwd = jax.jit(functools.partial(cond_filter_forward,
                                    nconds=nconds, emb_dim=emb_dim))
    out, loss = fwd(tokens, event_table)
    out = jax.block_until_ready(out)
    loss = jax.block_until_ready(loss)

    ref_out, ref_loss = _reference_forward(
        tokens, event_table, nconds=nconds, emb_dim=emb_dim)

    assert out.shape == (B, (1 + nconds) * emb_dim), out.shape
    assert jnp.allclose(out, ref_out, atol=1e-4, rtol=1e-4), \
        float(jnp.max(jnp.abs(out - ref_out)))
    assert jnp.allclose(loss, ref_loss, atol=1e-3, rtol=1e-4), \
        (float(loss), float(ref_loss))

    print("KERNEL_OK")
</pallas_src>

<mosaic_0001>
module attributes {stable_mosaic.version = 11 : i64} {
  func.func @cond_filter_kernel(%arg0: i32, %arg1: memref<32x1xi32, #tpu.memory_space<vmem>>, %arg2: memref<8x8xf32, #tpu.memory_space<vmem>>, %arg3: memref<8x32xf32, #tpu.memory_space<vmem>>, %arg4: memref<1x1xf32, #tpu.memory_space<smem>>) attributes {dimension_semantics = [#tpu.dimension_semantics<parallel>], iteration_bounds = array<i64: 1>, scalar_prefetch = 0 : i64, scratch_operands = 0 : i64, tpu.core_type = #tpu.core_type<tc>, window_params = [{transform_indices = @transform_0, window_bounds = array<i64: 32, 1>}, {pipeline_mode = #tpu.pipeline_mode<synchronous>, transform_indices = @transform_1, window_bounds = array<i64: 8, 8>}, {transform_indices = @transform_2, window_bounds = array<i64: 8, 32>}, {transform_indices = @transform_3, window_bounds = array<i64: 1, 1>}]} {
    %c0 = arith.constant 0 : index
    %c0_0 = arith.constant 0 : index
    %0 = vector.load %arg1[%c0, %c0_0] : memref<32x1xi32, #tpu.memory_space<vmem>>, vector<32x1xi32>
    %1 = tpu.iota {dimensions = array<i32: 1>} : vector<32x8xi32>
    %2 = vector.broadcast %0 : vector<32x1xi32> to vector<32x8xi32>
    %3 = arith.cmpi eq, %1, %2 : vector<32x8xi32>
    %4 = arith.extui %3 : vector<32x8xi1> to vector<32x8xi32>
    %5 = arith.sitofp %4 : vector<32x8xi32> to vector<32x8xf32>
    %c0_1 = arith.constant 0 : index
    %c0_2 = arith.constant 0 : index
    %6 = vector.load %arg2[%c0_1, %c0_2] : memref<8x8xf32, #tpu.memory_space<vmem>>, vector<8x8xf32>
    %cst = arith.constant dense<0.000000e+00> : vector<32x8xf32>
    %7 = tpu.matmul %5, %6, %cst {dimension_numbers = #tpu.dot_dimension_numbers<[1], [0], [0], [1], [0, 0, 1, 1], [], []>} : vector<32x8xf32>, vector<8x8xf32>, vector<32x8xf32> -> vector<32x8xf32>
    %8 = vector.extract_strided_slice %7 {offsets = [0, 0], sizes = [8, 8], strides = [1, 1]} : vector<32x8xf32> to vector<8x8xf32>
    %9 = vector.extract_strided_slice %7 {offsets = [8, 0], sizes = [24, 8], strides = [1, 1]} : vector<32x8xf32> to vector<24x8xf32>
    %10 = arith.mulf %8, %8 : vector<8x8xf32>
    %cst_3 = arith.constant dense<0.000000e+00> : vector<8xf32>
    %11 = vector.multi_reduction <add>, %10, %cst_3 [1] : vector<8x8xf32> to vector<8xf32>
    %12 = vector.shape_cast %11 : vector<8xf32> to vector<8x1xf32>
    %cst_4 = arith.constant 9.99999996E-13 : f32
    %13 = vector.broadcast %cst_4 : f32 to vector<8x1xf32>
    %14 = arith.addf %12, %13 : vector<8x1xf32>
    %15 = math.rsqrt %14 : vector<8x1xf32>
    %16 = tpu.concatenate %8, %8, %8 in 0 : vector<8x8xf32>, vector<8x8xf32>, vector<8x8xf32> -> vector<24x8xf32>
    %17 = tpu.concatenate %15, %15, %15 in 0 : vector<8x1xf32>, vector<8x1xf32>, vector<8x1xf32> -> vector<24x1xf32>
    %18 = arith.mulf %9, %9 : vector<24x8xf32>
    %cst_5 = arith.constant dense<0.000000e+00> : vector<24xf32>
    %19 = vector.multi_reduction <add>, %18, %cst_5 [1] : vector<24x8xf32> to vector<24xf32>
    %20 = vector.shape_cast %19 : vector<24xf32> to vector<24x1xf32>
    %cst_6 = arith.constant 9.99999996E-13 : f32
    %21 = vector.broadcast %cst_6 : f32 to vector<24x1xf32>
    %22 = arith.addf %20, %21 : vector<24x1xf32>
    %23 = math.rsqrt %22 : vector<24x1xf32>
    %24 = arith.mulf %16, %9 : vector<24x8xf32>
    %cst_7 = arith.constant dense<0.000000e+00> : vector<24xf32>
    %25 = vector.multi_reduction <add>, %24, %cst_7 [1] : vector<24x8xf32> to vector<24xf32>
    %26 = vector.shape_cast %25 : vector<24xf32> to vector<24x1xf32>
    %27 = arith.mulf %26, %17 : vector<24x1xf32>
    %28 = arith.mulf %23, %23 : vector<24x1xf32>
    %29 = arith.mulf %27, %28 : vector<24x1xf32>
    %30 = vector.broadcast %29 : vector<24x1xf32> to vector<24x8xf32>
    %31 = arith.mulf %9, %30 : vector<24x8xf32>
    %32 = vector.extract_strided_slice %31 {offsets = [0, 0], sizes = [8, 8], strides = [1, 1]} : vector<24x8xf32> to vector<8x8xf32>
    %33 = vector.extract_strided_slice %31 {offsets = [8, 0], sizes = [8, 8], strides = [1, 1]} : vector<24x8xf32> to vector<8x8xf32>
    %34 = vector.extract_strided_slice %31 {offsets = [16, 0], sizes = [8, 8], strides = [1, 1]} : vector<24x8xf32> to vector<8x8xf32>
    %35 = tpu.concatenate %8, %32, %33, %34 in 1 : vector<8x8xf32>, vector<8x8xf32>, vector<8x8xf32>, vector<8x8xf32> -> vector<8x32xf32>
    %c0_8 = arith.constant 0 : index
    %c0_9 = arith.constant 0 : index
    %36 = vector.load %arg3[%c0_8, %c0_9] : memref<8x32xf32, #tpu.memory_space<vmem>>, vector<8x32xf32>
    tpu.vector_store %arg3[%c0_8, %c0_9], %35 {strides = array<i32>} : memref<8x32xf32, #tpu.memory_space<vmem>>, vector<8x32xf32>,
    %37 = math.absf %26 : vector<24x1xf32>
    %38 = arith.mulf %17, %23 : vector<24x1xf32>
    %39 = arith.mulf %37, %38 : vector<24x1xf32>
    %40 = vector.shape_cast %39 : vector<24x1xf32> to vector<1x24x1xf32>
    %cst_10 = arith.constant dense<0.000000e+00> : vector<1xf32>
    %41 = vector.multi_reduction <add>, %40, %cst_10 [1, 2] : vector<1x24x1xf32> to vector<1xf32>
    %42 = vector.shape_cast %41 : vector<1xf32> to vector<1x1x1xf32>
    %43 = vector.extract %42[0, 0, 0] : f32 from vector<1x1x1xf32>
    %c0_11 = arith.constant 0 : index
    %c0_12 = arith.constant 0 : index
    %44 = memref.load %arg4[%c0_11, %c0_12] : memref<1x1xf32, #tpu.memory_space<smem>>
    memref.store %43, %arg4[%c0_11, %c0_12] : memref<1x1xf32, #tpu.memory_space<smem>>
    return
  }
  func.func @transform_0(%arg0: i32) -> (i32, i32) {
    %c0_i32 = arith.constant 0 : i32
    %c0_i32_0 = arith.constant 0 : i32
    return %arg0, %c0_i32 : i32, i32
  }
  func.func @transform_1(%arg0: i32) -> (i32, i32) {
    %c0_i32 = arith.constant 0 : i32
    %c0_i32_0 = arith.constant 0 : i32
    %c0_i32_1 = arith.constant 0 : i32
    return %c0_i32, %c0_i32_0 : i32, i32
  }
  func.func @transform_2(%arg0: i32) -> (i32, i32) {
    %c0_i32 = arith.constant 0 : i32
    %c0_i32_0 = arith.constant 0 : i32
    return %arg0, %c0_i32 : i32, i32
  }
  func.func @transform_3(%arg0: i32) -> (i32, i32) {
    %c0_i32 = arith.constant 0 : i32
    %c0_i32_0 = arith.constant 0 : i32
    return %arg0, %c0_i32 : i32, i32
  }
}

</mosaic_0001>

<llo_original>
// kernel: cond_filter_forward.1
$region0: #{cond_filter_forward.1}
  #allocation0 [shape = 'u32[]', space=smem, size = 0x4, offset = 0x4, fixed_abs, tag = 'smem constant byte address 0x4 - core index']
  #allocation1 [shape = 'u32[144,128]{1,0:T(1,128)}', space=vmem, size = 0x12000, scoped, tag = 'internal scratch']
  %s0 = inlined_call_operand.vmem [shape: s32[32,1], index: 0, kind: input, shape index: {}]
  %s1 = inlined_call_operand.vmem [shape: f32[8,8], index: 1, kind: input, shape index: {}]
  %s2 = inlined_call_operand.hbm [shape: f32[8,32], index: 2, kind: output, shape index: {0}]
  %s3 = inlined_call_operand.hbm [shape: f32[1,1], index: 3, kind: output, shape index: {1}]
  %4 = xla_tuple %s2, %s3
  %s5 = sld [smem:[#allocation0]]
  $region26: #{cond_filter_forward.1} parent=0
    _
  %s7 = ssub.s32 1, %s5
  %s8 = scalar_select 0, %s7, %s5
  $region1: #{cond_filter_forward.1} parent=0
    #allocation2 [shape = 'u8[4096]{0}', space=vmem, size = 0x1000, scoped, tag = 'output window, operand 0, single buffered']
    #allocation3 [shape = 's32[1]{0}', space=sflag, size = 0x4, scoped, tag = 'scoped memory for cond_filter_forward.1']
    #allocation4 [shape = 's32[1]{0}', space=sflag, size = 0x4, scoped, tag = 'scoped memory for cond_filter_forward.1']
    #allocation5 [shape = 'u8[512]{0}', space=smem, size = 0x200, scoped, tag = 'output window, operand 1, single buffered']
    %9 = vsyncpa [#allocation3], 0
    %10 = vsyncpa [#allocation4], 0
    // Predicated region
    $region2: #{cond_filter_forward.1} parent=1 // pred_check
      _
    $region3: #{cond_filter_forward.1} parent=1 // pred_check_branch
      %12 = sbr.rel (0) target = $region5
    $region4: #{cond_filter_forward.1} parent=1 // pred_region
      _
    $region5: #{cond_filter_forward.1} parent=1 // pred_fallthru
      _
    // Predicated region
    $region6: #{cond_filter_forward.1} parent=1 // pred_check
      _
    $region7: #{cond_filter_forward.1} parent=1 // pred_check_branch
      %14 = sbr.rel (0) target = $region9
    $region8: #{cond_filter_forward.1} parent=1 // pred_region
      _
    $region9: #{cond_filter_forward.1} parent=1 // pred_fallthru
      _
    %v15 = vld [vmem:[%s0] sm:$0xff]
    %v16 = vld [vmem:[%s0 + $0x8] sm:$0xff]
    %v17 = vld [vmem:[%s0 + $0x10] sm:$0xff]
    %v18 = vld [vmem:[%s0 + $0x18] sm:$0xff]
    %v19 = vlaneseq
    %v20 = vand.u32 %v19, 127
    %21 = vset.pattern.permute.xlu0 0
    %22 = vperm.xlu0 %21, %v15
    %v23 = vpop.permute.xlu0 %22
    %24 = vset.pattern.permute.xlu0 0
    %25 = vperm.xlu0 %24, %v16
    %v26 = vpop.permute.xlu0 %25
    %27 = vset.pattern.permute.xlu0 0
    %28 = vperm.xlu0 %27, %v17
    %v29 = vpop.permute.xlu0 %28
    %30 = vset.pattern.permute.xlu0 0
    %31 = vperm.xlu0 %30, %v18
    %v32 = vpop.permute.xlu0 %31
    %vm33 = vcmp.eq.s32.totalorder %v20, %v23
    %vm34 = vcmp.eq.s32.totalorder %v20, %v26
    %vm35 = vcmp.eq.s32.totalorder %v20, %v29
    %vm36 = vcmp.eq.s32.totalorder %v20, %v32
    %v37 = vsel %vm33, 1, 0
    %v38 = vsel %vm34, 1, 0
    %v39 = vsel %vm35, 1, 0
    %v40 = vsel %vm36, 1, 0
    %v41 = vcvt.s32.f32 %v37
    %v42 = vcvt.s32.f32 %v38
    %v43 = vcvt.s32.f32 %v39
    %v44 = vcvt.s32.f32 %v40
    %v45 = vld [vmem:[%s1] sm:$0xff]
    %vm46 = vcmask 64512
    %v48 = vsel %vm46, %v41, 0
    %v51 = vsel %vm46, %v42, 0
    %v54 = vsel %vm46, %v43, 0
    %v57 = vsel %vm46, %v44, 0
    %59 = vmatprep.subr.mxu0 0.0
    %60 = vmatpush1.msra.mxu0 0.0
    %61 = vmatprep.subr.mxu0 0.0
    %62 = vmatpush1.msra.mxu0 0.0
    %63 = vmatprep.subr.mxu0 0.0
    %64 = vmatpush1.msra.mxu0 0.0
    %65 = vmatprep.subr.mxu0 0.0
    %66 = vmatpush1.msra.mxu0 0.0
    %67 = vmatprep.subr.mxu0 0.0
    %68 = vmatpush1.msra.mxu0 0.0
    %69 = vmatprep.subr.mxu0 0.0
    %70 = vmatpush1.msra.mxu0 0.0
    %71 = vmatprep.subr.mxu0 0.0
    %72 = vmatpush1.msra.mxu0 0.0
    %73 = vmatprep.subr.mxu0 0.0
    %74 = vmatpush1.msra.mxu0 0.0
    %75 = vmatprep.subr.mxu0 0.0
    %76 = vmatpush1.msra.mxu0 0.0
    %77 = vmatprep.subr.mxu0 0.0
    %78 = vmatpush1.msra.mxu0 0.0
    %79 = vmatprep.subr.mxu0 0.0
    %80 = vmatpush1.msra.mxu0 0.0
    %81 = vmatprep.subr.mxu0 0.0
    %82 = vmatpush1.msra.mxu0 0.0
    %83 = vmatprep.subr.mxu0 0.0
    %84 = vmatpush1.msra.mxu0 0.0
    %85 = vmatprep.subr.mxu0 0.0
    %86 = vmatpush1.msra.mxu0 0.0
    %87 = vmatprep.subr.mxu0 0.0
    %88 = vmatpush1.msra.mxu0 0.0
    %89 = vmatprep.subr.mxu0 0.0
    %90 = vmatpush1.msra.mxu0 %v45
    %91 = vmatprep.subr.mxu0 0.0
    %92 = vmatpush2.msra.mxu0 0.0
    %93 = vmatprep.subr.mxu0 0.0
    %94 = vmatpush2.msra.mxu0 0.0
    %95 = vmatprep.subr.mxu0 0.0
    %96 = vmatpush2.msra.mxu0 0.0
    %97 = vmatprep.subr.mxu0 0.0
    %98 = vmatpush2.msra.mxu0 0.0
    %99 = vmatprep.subr.mxu0 0.0
    %100 = vmatpush2.msra.mxu0 0.0
    %101 = vmatprep.subr.mxu0 0.0
    %102 = vmatpush2.msra.mxu0 0.0
    %103 = vmatprep.subr.mxu0 0.0
    %104 = vmatpush2.msra.mxu0 0.0
    %105 = vmatprep.subr.mxu0 0.0
    %106 = vmatpush2.msra.mxu0 0.0
    %107 = vmatprep.subr.mxu0 0.0
    %108 = vmatpush2.msra.mxu0 0.0
    %109 = vmatprep.subr.mxu0 0.0
    %110 = vmatpush2.msra.mxu0 0.0
    %111 = vmatprep.subr.mxu0 0.0
    %112 = vmatpush2.msra.mxu0 0.0
    %113 = vmatprep.subr.mxu0 0.0
    %114 = vmatpush2.msra.mxu0 0.0
    %115 = vmatprep.subr.mxu0 0.0
    %116 = vmatpush2.msra.mxu0 0.0
    %117 = vmatprep.subr.mxu0 0.0
    %118 = vmatpush2.msra.mxu0 0.0
    %119 = vmatprep.subr.mxu0 0.0
    %120 = vmatpush2.msra.mxu0 0.0
    %121 = vmatprep.subr.mxu0 0.0
    %122 = vmatpush2.msra.mxu0 0.0
    %123 = vmatprep.mubr.f32.mxu0 0.0
    %124 = vmatmul.mubr.f32.gmra.mxu0 %v48
    %v125 = vpop.f32.mrf.mxu0
    %v126 = vadd.f32 0.0, %v125
    %v127 = vpop.f32.mrf.mxu0
    %128 = vmatprep.mubr.f32.mxu0 0.0
    %129 = vmatmul.mubr.f32.gmra.mxu0 %v51
    %v130 = vpop.f32.mrf.mxu0
    %v131 = vadd.f32 0.0, %v130
    %v132 = vpop.f32.mrf.mxu0
    %133 = vmatprep.mubr.f32.mxu0 0.0
    %134 = vmatmul.mubr.f32.gmra.mxu0 %v54
    %v135 = vpop.f32.mrf.mxu0
    %v136 = vadd.f32 0.0, %v135
    %v137 = vpop.f32.mrf.mxu0
    %138 = vmatprep.mubr.f32.mxu0 0.0
    %139 = vmatmul.mubr.f32.gmra.mxu0 %v57
    %v140 = vpop.f32.mrf.mxu0
    %v141 = vadd.f32 0.0, %v140
    %v142 = vpop.f32.mrf.mxu0
    %143 = vdwg.mxu0
    %v144 = vmul.f32 %v126, %v126
    %v145 = vsel %vm46, %v144, 0.0
    %146 = vadd.xlane.f32.xlu0 %v145
    %v147 = vpop.xlane.xlu0 %146
    %v148 = vadd.f32 %v147, 1e-12
    %v149 = vrsqrt.pop %v148
    %v150 = vmul.f32 %v131, %v131
    %v151 = vmul.f32 %v136, %v136
    %v152 = vmul.f32 %v141, %v141
    %v153 = vsel %vm46, %v150, 0.0
    %154 = vadd.xlane.f32.xlu0 %v153
    %v155 = vpop.xlane.xlu0 %154
    %v156 = vsel %vm46, %v151, 0.0
    %157 = vadd.xlane.f32.xlu0 %v156
    %v158 = vpop.xlane.xlu0 %157
    %v159 = vsel %vm46, %v152, 0.0
    %160 = vadd.xlane.f32.xlu0 %v159
    %v161 = vpop.xlane.xlu0 %160
    %v162 = vadd.f32 %v155, 1e-12
    %v163 = vadd.f32 %v158, 1e-12
    %v164 = vadd.f32 %v161, 1e-12
    %v165 = vrsqrt.pop %v162
    %v166 = vrsqrt.pop %v163
    %v167 = vrsqrt.pop %v164
    %v168 = vmul.f32 %v126, %v131
    %v169 = vmul.f32 %v126, %v136
    %v170 = vmul.f32 %v126, %v141
    %v171 = vsel %vm46, %v168, 0.0
    %172 = vadd.xlane.f32.xlu0 %v171
    %v173 = vpop.xlane.xlu0 %172
    %v174 = vsel %vm46, %v169, 0.0
    %175 = vadd.xlane.f32.xlu0 %v174
    %v176 = vpop.xlane.xlu0 %175
    %v177 = vsel %vm46, %v170, 0.0
    %178 = vadd.xlane.f32.xlu0 %v177
    %v179 = vpop.xlane.xlu0 %178
    %v180 = vmul.f32 %v173, %v149
    %v181 = vmul.f32 %v176, %v149
    %v182 = vmul.f32 %v179, %v149
    %v183 = vmul.f32 %v165, %v165
    %v184 = vmul.f32 %v166, %v166
    %v185 = vmul.f32 %v167, %v167
    %v186 = vmul.f32 %v180, %v183
    %v187 = vmul.f32 %v181, %v184
    %v188 = vmul.f32 %v182, %v185
    %190 = vset.pattern.permute.xlu0 0
    %191 = vperm.xlu0 %190, %v186
    %v192 = vpop.permute.xlu0 %191
    %195 = vset.pattern.permute.xlu0 0
    %196 = vperm.xlu0 %195, %v187
    %v197 = vpop.permute.xlu0 %196
    %200 = vset.pattern.permute.xlu0 0
    %201 = vperm.xlu0 %200, %v188
    %v202 = vpop.permute.xlu0 %201
    %v204 = vmul.f32 %v131, %v192
    %v205 = vmul.f32 %v136, %v197
    %v206 = vmul.f32 %v141, %v202
    %208 = vrot.lane.b32.xlu0 %v204, 8
    %v209 = vpop.permute.xlu0 %208
    %212 = vrot.lane.b32.xlu0 %v205, 16
    %v213 = vpop.permute.xlu0 %212
    %216 = vrot.lane.b32.xlu0 %v206, 24
    %v217 = vpop.permute.xlu0 %216
    %v219 = vsel %vm46, %v126, %v209
    %vm220 = vcmask 130048
    %v221 = vsel %vm220, %v219, %v213
    %vm222 = vcmask 195584
    %v223 = vsel %vm222, %v221, %v217
    %vm224 = vcmask 261120
    %225 = vst.msk [vmem:[#allocation2] sm:$0xff] %vm224, %v223
    %v226 = vand.u32 2147483647, %v173
    %v227 = vand.u32 2147483647, %v176
    %v228 = vand.u32 2147483647, %v179
    %v229 = vmul.f32 %v149, %v165
    %v230 = vmul.f32 %v149, %v166
    %v231 = vmul.f32 %v149, %v167
    %v232 = vmul.f32 %v226, %v229
    %v233 = vmul.f32 %v227, %v230
    %v234 = vmul.f32 %v228, %v231
    %vm235 = vcmask 7168
    %v236 = vsel %vm235, %v232, 0.0
    %v237 = vsel %vm235, %v233, 0.0
    %v238 = vadd.f32 %v236, %v237
    %v239 = vsel %vm235, %v234, 0.0
    %v240 = vadd.f32 %v238, %v239
    %241 = vadd.xlane.f32.xlu0 %v240
    %v242 = vpop.xlane.xlu0 %241
    %v243 = vrot.slane %v242, 4
    %v244 = vadd.f32 %v242, %v243
    %v245 = vrot.slane %v244, 2
    %v246 = vadd.f32 %v244, %v245
    %v247 = vrot.slane %v246, 1
    %v248 = vadd.f32 %v246, %v247
    %s249 = vtos %v248
    %s250 = scalar_lea.smem [#allocation5], 0
    %251 = sst [smem:[%s250]] %s249
    // Predicated region
    $region10: #{cond_filter_forward.1} parent=1 // pred_check
      _
    $region11: #{cond_filter_forward.1} parent=1 // pred_check_branch
      %253 = sbr.rel (0) target = $region13
    $region12: #{cond_filter_forward.1} parent=1 // pred_region
      %s255 = ssub.s32 128, 128
      %256 = vsyncadd [#allocation3], %s255
      %s258 = sshll.u32 [#allocation2], 4
      %s259 = int_to_ptr.vmem [resolvable:$true] %s258
      %261 = dma.vmem_to_hbm [thread:$0]  %s259, 128, %s2, [#allocation3]
    $region13: #{cond_filter_forward.1} parent=1 // pred_fallthru
      _
    // Predicated region
    $region14: #{cond_filter_forward.1} parent=1 // pred_check
      _
    $region15: #{cond_filter_forward.1} parent=1 // pred_check_branch
      %263 = sbr.rel (0) target = $region17
    $region16: #{cond_filter_forward.1} parent=1 // pred_region
      %s265 = ssub.s32 16, 16
      %266 = vsyncadd [#allocation4], %s265
      %269 = dma.smem_to_hbm [#allocation5], 16, %s3, [#allocation4]
    $region17: #{cond_filter_forward.1} parent=1 // pred_fallthru
      _
    // Predicated region
    $region18: #{cond_filter_forward.1} parent=1 // pred_check
      _
    $region19: #{cond_filter_forward.1} parent=1 // pred_check_branch
      %271 = sbr.rel (0) target = $region21
    $region20: #{cond_filter_forward.1} parent=1 // pred_region
      %272 = dma.done [#allocation3], 128
    $region21: #{cond_filter_forward.1} parent=1 // pred_fallthru
      _
    // Predicated region
    $region22: #{cond_filter_forward.1} parent=1 // pred_check
      _
    $region23: #{cond_filter_forward.1} parent=1 // pred_check_branch
      %274 = sbr.rel (0) target = $region25
    $region24: #{cond_filter_forward.1} parent=1 // pred_region
      %275 = dma.done [#allocation4], 16
    $region25: #{cond_filter_forward.1} parent=1 // pred_fallthru
      _
    %276 = sfence
    %277 = vsyncpa [#allocation3], 1
    %278 = vsyncpa [#allocation4], 1

</llo_original>
